<compile_context>
chip_gen: v7x
topology: tpu7x:2x2x1
jax: 0.10.0
libtpu: 0.0.40
codegen_flags: <defaults>
</compile_context>

<pallas_src>
import jax
import jax.numpy as jnp
from jax.experimental import pallas as pl
from jax.experimental.pallas import tpu as pltpu


def _linear_kernel(x_ref, w_ref, b_ref, o_ref):
    # x_ref: (TM, F*d_inp)  w_ref: (F*d_inp, F*d_model)  b_ref: (1, F*d_model)
    acc = jnp.dot(x_ref[...], w_ref[...], preferred_element_type=jnp.float32)
    o_ref[...] = (acc + b_ref[...]).astype(o_ref.dtype)


def _round_up(n, m):
    return ((n + m - 1) // m) * m


def time_feature_embedding(x, weight, bias, *, tm=512, lane_target=256,
                           param_dtype=None):
    """x: (B, L, d_inp); weight: (d_inp, d_model); bias: (d_model,).

    tm:          folded-row tile size (clamped to the problem; multiple of 8).
                 512-2048 keeps 2x double-buffered tiles well under the 32 MiB
                 scoped-VMEM default even on v7x (64 MiB physical).
    lane_target: desired lane width of the folded output (256 for v6e/v7x
                 MXUs; pass 128 if tuning specifically for v5e).
    param_dtype: e.g. jnp.bfloat16 to halve HBM traffic on the matmul inputs
                 (accumulation stays f32).  Default None keeps f32 end-to-end.
    """
    B, L, d_inp = x.shape
    d_model = weight.shape[1]
    M = B * L
    out_dtype = x.dtype

    # Fold factor: pack F consecutive rows into the lane dimension so the
    # output's last dim is ~lane_target (a multiple of 128 when d_model | 128).
    F = max(1, lane_target // d_model)
    n_lanes = F * d_model
    k_dim = F * d_inp

    # Block-diagonal weight (F*d_inp, F*d_model) and F-tiled bias.
    w_blk = jnp.kron(jnp.eye(F, dtype=weight.dtype), weight)
    b_blk = jnp.tile(bias, F).reshape(1, n_lanes).astype(jnp.float32)

    # Pad rows so M_padded = grid_m * tm_eff * F (tm_eff multiple of 8).
    m_fold = pl.cdiv(M, F)
    tm_eff = min(tm, _round_up(m_fold, 8))
    grid_m = pl.cdiv(m_fold, tm_eff)
    m_fold_pad = grid_m * tm_eff
    m_pad = m_fold_pad * F

    x2d = x.reshape(M, d_inp)
    if m_pad != M:
        x2d = jnp.pad(x2d, ((0, m_pad - M), (0, 0)))
    x_folded = x2d.reshape(m_fold_pad, k_dim)

    if param_dtype is not None:
        x_folded = x_folded.astype(param_dtype)
        w_blk = w_blk.astype(param_dtype)

    itemsize = jnp.dtype(x_folded.dtype).itemsize
    cost = pl.CostEstimate(
        flops=2 * m_pad * d_inp * d_model,
        transcendentals=0,
        bytes_accessed=(x_folded.size + w_blk.size) * itemsize
        + b_blk.size * 4
        + m_fold_pad * n_lanes * jnp.dtype(out_dtype).itemsize,
    )

    out_folded = pl.pallas_call(
        _linear_kernel,
        out_shape=jax.ShapeDtypeStruct((m_fold_pad, n_lanes), out_dtype),
        grid=(grid_m,),
        in_specs=[
            pl.BlockSpec((tm_eff, k_dim), lambda i: (i, 0)),     # x tiles
            pl.BlockSpec((k_dim, n_lanes), lambda i: (0, 0)),    # W resident
            pl.BlockSpec((1, n_lanes), lambda i: (0, 0)),        # b resident
        ],
        out_specs=pl.BlockSpec((tm_eff, n_lanes), lambda i: (i, 0)),
        compiler_params=pltpu.CompilerParams(
            dimension_semantics=("parallel",)),
        cost_estimate=cost,
    )(x_folded, w_blk, b_blk)

    out2d = out_folded.reshape(m_pad, d_model)[:M]
    return out2d.reshape(B, L, d_model)


if __name__ == "__main__":
    # freq='h' -> d_inp = 4 ; small d_model, batch, seq
    d_inp = 4
    d_model = 32
    B, L = 2, 8

    key = jax.random.PRNGKey(0)
    kx, kw, kb = jax.random.split(key, 3)

    x = jax.random.normal(kx, (B, L, d_inp), dtype=jnp.float32)
    # Deterministic "nn.Linear"-style params (synthetic, not a checkpoint).
    bound = 1.0 / jnp.sqrt(d_inp)
    weight = jax.random.uniform(kw, (d_inp, d_model), minval=-bound,
                                maxval=bound, dtype=jnp.float32)
    bias = jax.random.uniform(kb, (d_model,), minval=-bound, maxval=bound,
                              dtype=jnp.float32)

    out = jax.block_until_ready(time_feature_embedding(x, weight, bias))

    # Reference check in plain JAX.
    ref = x @ weight + bias
    assert out.shape == (B, L, d_model)
    assert jnp.allclose(out, ref, atol=1e-5, rtol=1e-5)

    print("KERNEL_OK")
</pallas_src>

<mosaic_0001>
module attributes {stable_mosaic.version = 11 : i64} {
  func.func @_linear_kernel(%arg0: i32, %arg1: memref<8x32xf32, #tpu.memory_space<vmem>>, %arg2: memref<32x256xf32, #tpu.memory_space<vmem>>, %arg3: memref<1x256xf32, #tpu.memory_space<vmem>>, %arg4: memref<8x256xf32, #tpu.memory_space<vmem>>) attributes {dimension_semantics = [#tpu.dimension_semantics<parallel>], iteration_bounds = array<i64: 1>, scalar_prefetch = 0 : i64, scratch_operands = 0 : i64, tpu.core_type = #tpu.core_type<tc>, window_params = [{transform_indices = @transform_0, window_bounds = array<i64: 8, 32>}, {pipeline_mode = #tpu.pipeline_mode<synchronous>, transform_indices = @transform_1, window_bounds = array<i64: 32, 256>}, {pipeline_mode = #tpu.pipeline_mode<synchronous>, transform_indices = @transform_2, window_bounds = array<i64: 1, 256>}, {transform_indices = @transform_3, window_bounds = array<i64: 8, 256>}]} {
    %c0 = arith.constant 0 : index
    %c0_0 = arith.constant 0 : index
    %0 = vector.load %arg1[%c0, %c0_0] : memref<8x32xf32, #tpu.memory_space<vmem>>, vector<8x32xf32>
    %c0_1 = arith.constant 0 : index
    %c0_2 = arith.constant 0 : index
    %1 = vector.load %arg2[%c0_1, %c0_2] : memref<32x256xf32, #tpu.memory_space<vmem>>, vector<32x256xf32>
    %cst = arith.constant dense<0.000000e+00> : vector<8x256xf32>
    %2 = tpu.matmul %0, %1, %cst {dimension_numbers = #tpu.dot_dimension_numbers<[1], [0], [0], [1], [0, 0, 1, 1], [], []>} : vector<8x32xf32>, vector<32x256xf32>, vector<8x256xf32> -> vector<8x256xf32>
    %c0_3 = arith.constant 0 : index
    %c0_4 = arith.constant 0 : index
    %3 = vector.load %arg3[%c0_3, %c0_4] : memref<1x256xf32, #tpu.memory_space<vmem>>, vector<1x256xf32>
    %4 = vector.broadcast %3 : vector<1x256xf32> to vector<8x256xf32>
    %5 = arith.addf %2, %4 : vector<8x256xf32>
    %c0_5 = arith.constant 0 : index
    %c0_6 = arith.constant 0 : index
    %6 = vector.load %arg4[%c0_5, %c0_6] : memref<8x256xf32, #tpu.memory_space<vmem>>, vector<8x256xf32>
    tpu.vector_store %arg4[%c0_5, %c0_6], %5 {strides = array<i32>} : memref<8x256xf32, #tpu.memory_space<vmem>>, vector<8x256xf32>,
    return
  }
  func.func @transform_0(%arg0: i32) -> (i32, i32) {
    %c0_i32 = arith.constant 0 : i32
    %c0_i32_0 = arith.constant 0 : i32
    return %arg0, %c0_i32 : i32, i32
  }
  func.func @transform_1(%arg0: i32) -> (i32, i32) {
    %c0_i32 = arith.constant 0 : i32
    %c0_i32_0 = arith.constant 0 : i32
    %c0_i32_1 = arith.constant 0 : i32
    return %c0_i32, %c0_i32_0 : i32, i32
  }
  func.func @transform_2(%arg0: i32) -> (i32, i32) {
    %c0_i32 = arith.constant 0 : i32
    %c0_i32_0 = arith.constant 0 : i32
    %c0_i32_1 = arith.constant 0 : i32
    return %c0_i32, %c0_i32_0 : i32, i32
  }
  func.func @transform_3(%arg0: i32) -> (i32, i32) {
    %c0_i32 = arith.constant 0 : i32
    %c0_i32_0 = arith.constant 0 : i32
    return %arg0, %c0_i32 : i32, i32
  }
}

</mosaic_0001>

<llo_original>
// kernel: tpu_custom_call.1
$region0: #{tpu_custom_call.1}
  #allocation0 [shape = 'u32[]', space=smem, size = 0x4, offset = 0x4, fixed_abs, tag = 'smem constant byte address 0x4 - core index']
  #allocation1 [shape = 'u32[144,128]{1,0:T(1,128)}', space=vmem, size = 0x12000, scoped, tag = 'internal scratch']
  %s0 = inlined_call_operand.hbm [shape: f32[8,32], index: 0, kind: input, shape index: {}]
  %s1 = inlined_call_operand.hbm [shape: f32[32,256], index: 1, kind: input, shape index: {}]
  %s2 = inlined_call_operand.vmem [shape: f32[1,256], index: 2, kind: input, shape index: {}]
  %s3 = inlined_call_operand.hbm [shape: f32[8,256], index: 3, kind: output, shape index: {}]
  %s4 = sld [smem:[#allocation0]]
  $region30: #{tpu_custom_call.1} parent=0
    _
  %s6 = ssub.s32 1, %s4
  %s7 = scalar_select 0, %s6, %s4
  $region1: #{tpu_custom_call.1} parent=0
    #allocation2 [shape = 'u8[4096]{0}', space=vmem, size = 0x1000, scoped, tag = 'input window, operand 0, single buffered']
    #allocation3 [shape = 's32[1]{0}', space=sflag, size = 0x4, scoped, tag = 'scoped memory for tpu_custom_call.1']
    #allocation4 [shape = 's32[1]{0}', space=sflag, size = 0x4, scoped, tag = 'scoped memory for tpu_custom_call.1']
    #allocation5 [shape = 'u8[32768]{0}', space=vmem, size = 0x8000, scoped, tag = 'input window, operand 1, single buffered']
    #allocation6 [shape = 's32[1]{0}', space=sflag, size = 0x4, scoped, tag = 'scoped memory for tpu_custom_call.1']
    #allocation7 [shape = 'u8[8192]{0}', space=vmem, size = 0x2000, scoped, tag = 'output window, operand 0, single buffered']
    %8 = vsyncpa [#allocation3], 0
    %9 = vsyncpa [#allocation6], 0
    %10 = vsyncpa [#allocation4], 0
    // Predicated region
    $region2: #{tpu_custom_call.1} parent=1 // pred_check
      _
    $region3: #{tpu_custom_call.1} parent=1 // pred_check_branch
      %12 = sbr.rel (0) target = $region5
    $region4: #{tpu_custom_call.1} parent=1 // pred_region
      %s14 = ssub.s32 128, 128
      %15 = vsyncadd [#allocation3], %s14
      %s17 = sshll.u32 [#allocation2], 4
      %s18 = int_to_ptr.vmem [resolvable:$true] %s17
      %20 = dma.hbm_to_vmem [thread:$0]  %s0, 128, %s18, [#allocation3]
    $region5: #{tpu_custom_call.1} parent=1 // pred_fallthru
      _
    // Predicated region
    $region6: #{tpu_custom_call.1} parent=1 // pred_check
      _
    $region7: #{tpu_custom_call.1} parent=1 // pred_check_branch
      %22 = sbr.rel (0) target = $region9
    $region8: #{tpu_custom_call.1} parent=1 // pred_region
      %s24 = ssub.s32 1024, 1024
      %25 = vsyncadd [#allocation6], %s24
      %s26 = sshll.u32 [#allocation5], 4
      %s27 = int_to_ptr.vmem [resolvable:$true] %s26
      %32 = dma.hbm_to_vmem [thread:$0]  %s1, 1024, %s27, [#allocation6], 256, 256, 16
    $region9: #{tpu_custom_call.1} parent=1 // pred_fallthru
      _
    // Predicated region
    $region10: #{tpu_custom_call.1} parent=1 // pred_check
      _
    $region11: #{tpu_custom_call.1} parent=1 // pred_check_branch
      %34 = sbr.rel (0) target = $region13
    $region12: #{tpu_custom_call.1} parent=1 // pred_region
      _
    $region13: #{tpu_custom_call.1} parent=1 // pred_fallthru
      _
    // Predicated region
    $region14: #{tpu_custom_call.1} parent=1 // pred_check
      _
    $region15: #{tpu_custom_call.1} parent=1 // pred_check_branch
      %36 = sbr.rel (0) target = $region17
    $region16: #{tpu_custom_call.1} parent=1 // pred_region
      %37 = dma.done [#allocation3], 128
    $region17: #{tpu_custom_call.1} parent=1 // pred_fallthru
      _
    // Predicated region
    $region18: #{tpu_custom_call.1} parent=1 // pred_check
      _
    $region19: #{tpu_custom_call.1} parent=1 // pred_check_branch
      %39 = sbr.rel (0) target = $region21
    $region20: #{tpu_custom_call.1} parent=1 // pred_region
      %40 = dma.done [#allocation6], 1024
    $region21: #{tpu_custom_call.1} parent=1 // pred_fallthru
      _
    %v41 = vld [vmem:[#allocation2] sm:$0xff]
    %v42 = vld [vmem:[#allocation5] sm:$0xff]
    %v43 = vld [vmem:[#allocation5 + $0x8] sm:$0xff]
    %v44 = vld [vmem:[#allocation5 + $0x10] sm:$0xff]
    %v45 = vld [vmem:[#allocation5 + $0x18] sm:$0xff]
    %v46 = vld [vmem:[#allocation5 + $0x20] sm:$0xff]
    %v47 = vld [vmem:[#allocation5 + $0x28] sm:$0xff]
    %v48 = vld [vmem:[#allocation5 + $0x30] sm:$0xff]
    %v49 = vld [vmem:[#allocation5 + $0x38] sm:$0xff]
    %v50 = vld [vmem:[%s2] sm:$0x3]
    %v52 = vlaneseq
    %v53 = vshrl.u32 %v52, 7
    %v54 = vsub.s32 0, %v53
    %v55 = vrot.slane %v50, %v54
    %v56 = vlaneseq
    %v57 = vshrl.u32 %v56, 7
    %v58 = vsub.s32 1, %v57
    %v59 = vrot.slane %v50, %v58
    %vm62 = vcmask 261120
    %v64 = vsel %vm62, %v41, 0
    %66 = vmatprep.subr.mxu0 %v43
    %67 = vmatpush1.msra.mxu0 %v42
    %68 = vmatprep.subr.mxu0 %v45
    %69 = vmatpush1.msra.mxu0 %v44
    %70 = vmatprep.subr.mxu0 %v47
    %71 = vmatpush1.msra.mxu0 %v46
    %72 = vmatprep.subr.mxu0 %v49
    %73 = vmatpush1.msra.mxu0 %v48
    %74 = vmatprep.subr.mxu0 0.0
    %75 = vmatpush1.msra.mxu0 0.0
    %76 = vmatprep.subr.mxu0 0.0
    %77 = vmatpush1.msra.mxu0 0.0
    %78 = vmatprep.subr.mxu0 0.0
    %79 = vmatpush1.msra.mxu0 0.0
    %80 = vmatprep.subr.mxu0 0.0
    %81 = vmatpush1.msra.mxu0 0.0
    %82 = vmatprep.subr.mxu0 0.0
    %83 = vmatpush1.msra.mxu0 0.0
    %84 = vmatprep.subr.mxu0 0.0
    %85 = vmatpush1.msra.mxu0 0.0
    %86 = vmatprep.subr.mxu0 0.0
    %87 = vmatpush1.msra.mxu0 0.0
    %88 = vmatprep.subr.mxu0 0.0
    %89 = vmatpush1.msra.mxu0 0.0
    %90 = vmatprep.subr.mxu0 0.0
    %91 = vmatpush1.msra.mxu0 0.0
    %92 = vmatprep.subr.mxu0 0.0
    %93 = vmatpush1.msra.mxu0 0.0
    %94 = vmatprep.subr.mxu0 0.0
    %95 = vmatpush1.msra.mxu0 0.0
    %96 = vmatprep.subr.mxu0 0.0
    %97 = vmatpush1.msra.mxu0 0.0
    %98 = vmatprep.subr.mxu0 0.0
    %99 = vmatpush1.msra.mxu0 0.0
    %100 = vmatprep.subr.mxu0 0.0
    %101 = vmatpush1.msra.mxu0 0.0
    %102 = vmatprep.subr.mxu0 0.0
    %103 = vmatpush1.msra.mxu0 0.0
    %104 = vmatprep.subr.mxu0 0.0
    %105 = vmatpush1.msra.mxu0 0.0
    %106 = vmatprep.subr.mxu0 0.0
    %107 = vmatpush1.msra.mxu0 0.0
    %108 = vmatprep.subr.mxu0 0.0
    %109 = vmatpush1.msra.mxu0 0.0
    %110 = vmatprep.subr.mxu0 0.0
    %111 = vmatpush1.msra.mxu0 0.0
    %112 = vmatprep.subr.mxu0 0.0
    %113 = vmatpush1.msra.mxu0 0.0
    %114 = vmatprep.subr.mxu0 0.0
    %115 = vmatpush1.msra.mxu0 0.0
    %116 = vmatprep.subr.mxu0 0.0
    %117 = vmatpush1.msra.mxu0 0.0
    %118 = vmatprep.subr.mxu0 0.0
    %119 = vmatpush1.msra.mxu0 0.0
    %120 = vmatprep.subr.mxu0 0.0
    %121 = vmatpush1.msra.mxu0 0.0
    %122 = vmatprep.subr.mxu0 0.0
    %123 = vmatpush1.msra.mxu0 0.0
    %124 = vmatprep.subr.mxu0 0.0
    %125 = vmatpush1.msra.mxu0 0.0
    %126 = vmatprep.subr.mxu0 0.0
    %127 = vmatpush1.msra.mxu0 0.0
    %128 = vmatprep.subr.mxu0 0.0
    %129 = vmatpush1.msra.mxu0 0.0
    %130 = vmatprep.mubr.f32.mxu0 0.0
    %131 = vmatmul.mubr.f32.gmra.mrb[0].mxu0 %v64
    %v132 = vpop.f32.mrb[0].mxu0
    %v133 = vadd.f32 %v55, %v132
    %v134 = vpop.f32.mrb[0].mxu0
    %v135 = vadd.f32 %v59, %v134
    %136 = vdwg.mxu0
    %137 = vst [vmem:[#allocation7] sm:$0xff] %v133
    %138 = vst [vmem:[#allocation7 + $0x8] sm:$0xff] %v135
    // Predicated region
    $region22: #{tpu_custom_call.1} parent=1 // pred_check
      _
    $region23: #{tpu_custom_call.1} parent=1 // pred_check_branch
      %140 = sbr.rel (0) target = $region25
    $region24: #{tpu_custom_call.1} parent=1 // pred_region
      %s142 = ssub.s32 256, 256
      %143 = vsyncadd [#allocation4], %s142
      %s145 = sshll.u32 [#allocation7], 4
      %s146 = int_to_ptr.vmem [resolvable:$true] %s145
      %148 = dma.vmem_to_hbm [thread:$0]  %s146, 256, %s3, [#allocation4]
    $region25: #{tpu_custom_call.1} parent=1 // pred_fallthru
      _
    // Predicated region
    $region26: #{tpu_custom_call.1} parent=1 // pred_check
      _
    $region27: #{tpu_custom_call.1} parent=1 // pred_check_branch
      %150 = sbr.rel (0) target = $region29
    $region28: #{tpu_custom_call.1} parent=1 // pred_region
      %151 = dma.done [#allocation4], 256
    $region29: #{tpu_custom_call.1} parent=1 // pred_fallthru
      _
    %152 = vsyncpa [#allocation3], 1
    %153 = vsyncpa [#allocation6], 1
    %154 = vsyncpa [#allocation4], 1

</llo_original>
